<compile_context>
chip_gen: v5e
topology: v5e:2x2
jax: 0.10.0
libtpu: 0.0.40
codegen_flags: <defaults>
</compile_context>

<pallas_src>
import jax
import jax.numpy as jnp
import numpy as np
from jax.experimental import pallas as pl
from jax.experimental.pallas import tpu as pltpu

DROPOUT_P = 0.3
LANE = 128      # lane width (last-dim tiling unit)
SUBLANE = 8     # f32 sublane height (second-to-last-dim tiling unit)


def _round_up(n, m):
    return ((n + m - 1) // m) * m


# ----------------------------- kernels --------------------------------------
def mlp_eval_kernel(x_ref, w1_ref, b1_ref, w2_ref, b2_ref, o_ref):
    # Linear1 (bf16 MXU inputs, f32 accumulate) + bias + ReLU.
    # Dropout is identity in eval mode.
    h = jnp.dot(x_ref[...].astype(jnp.bfloat16), w1_ref[...],
                preferred_element_type=jnp.float32)
    h = jnp.maximum(h + b1_ref[...], 0.0)
    # Linear2 + bias + ReLU.
    y = jnp.dot(h.astype(jnp.bfloat16), w2_ref[...],
                preferred_element_type=jnp.float32)
    o_ref[...] = jnp.maximum(y + b2_ref[...], 0.0)


def mlp_train_kernel(x_ref, w1_ref, b1_ref, w2_ref, b2_ref,
                     u1_ref, u2_ref, o_ref):
    # Training forward: inverted dropout (keep-prob 1-p, scaled by 1/(1-p))
    # using precomputed uniform(0,1) masks tiled per batch block.
    # TODO(synk): on a TPU-only deployment the masks could instead be generated
    # on-chip with pltpu.prng_seed(seed + pl.program_id(0)) +
    # pltpu.prng_random_bits; that primitive has no CPU/interpret lowering,
    # so uniforms are streamed in here.
    keep_scale = jnp.float32(1.0 / (1.0 - DROPOUT_P))
    p = jnp.float32(DROPOUT_P)

    h = jnp.dot(x_ref[...].astype(jnp.bfloat16), w1_ref[...],
                preferred_element_type=jnp.float32)
    h = jnp.maximum(h + b1_ref[...], 0.0)
    h = jnp.where(u1_ref[...] >= p, h * keep_scale, jnp.float32(0.0))

    y = jnp.dot(h.astype(jnp.bfloat16), w2_ref[...],
                preferred_element_type=jnp.float32)
    y = jnp.maximum(y + b2_ref[...], 0.0)
    o_ref[...] = jnp.where(u2_ref[...] >= p, y * keep_scale, jnp.float32(0.0))


# ----------------------------- wrappers --------------------------------------
def _prep_params(w1, b1, w2, b2):
    """Pad H/O up to lane multiples; cast weights to bf16, biases stay f32."""
    Din, H = w1.shape
    _, O = w2.shape
    Hp = _round_up(H, LANE)
    Op = _round_up(O, LANE)
    w1p = jnp.zeros((Din, Hp), jnp.bfloat16).at[:, :H].set(w1.astype(jnp.bfloat16))
    b1p = jnp.zeros((1, Hp), jnp.float32).at[:, :H].set(b1.reshape(1, H))
    w2p = jnp.zeros((Hp, Op), jnp.bfloat16).at[:H, :O].set(w2.astype(jnp.bfloat16))
    b2p = jnp.zeros((1, Op), jnp.float32).at[:, :O].set(b2.reshape(1, O))
    return w1p, b1p, w2p, b2p, Hp, Op


def _batch_tiling(B, max_tb=256):
    """Pick a batch tile (multiple of the sublane height) and padded batch."""
    TB = min(max_tb, _round_up(B, SUBLANE))
    B_pad = _round_up(B, TB)
    return TB, B_pad


def _pad_rows(a, B_pad, fill=0.0):
    B = a.shape[0]
    if B_pad == B:
        return a
    return jnp.full((B_pad,) + a.shape[1:], fill, a.dtype).at[:B].set(a)


def _compiler_params():
    # Explicit VMEM budget (safe on v5e/v6e/v7x scoped limits); batch axis is
    # independent -> parallel for megacore sharding on v7x.
    return pltpu.CompilerParams(
        dimension_semantics=("parallel",),
        vmem_limit_bytes=32 * 1024 * 1024,
    )


def mlp_block_eval(x, w1, b1, w2, b2, *, max_tb=256):
    B, Din = x.shape
    O = w2.shape[1]
    w1p, b1p, w2p, b2p, Hp, Op = _prep_params(w1, b1, w2, b2)
    TB, B_pad = _batch_tiling(B, max_tb)
    xp = _pad_rows(x, B_pad)
    nb = B_pad // TB

    flops = 2 * B_pad * Din * Hp + 2 * B_pad * Hp * Op
    bytes_accessed = (xp.size * 4 + w1p.size * 2 + w2p.size * 2
                      + b1p.size * 4 + b2p.size * 4 + B_pad * Op * 4)

    out = pl.pallas_call(
        mlp_eval_kernel,
        out_shape=jax.ShapeDtypeStruct((B_pad, Op), jnp.float32),
        grid_spec=pltpu.PrefetchScalarGridSpec(
            num_scalar_prefetch=0,
            grid=(nb,),
            in_specs=[
                pl.BlockSpec((TB, Din), lambda i: (i, 0)),   # x: batch-tiled
                pl.BlockSpec((Din, Hp), lambda i: (0, 0)),   # W1: VMEM-resident
                pl.BlockSpec((1, Hp), lambda i: (0, 0)),     # b1
                pl.BlockSpec((Hp, Op), lambda i: (0, 0)),    # W2: VMEM-resident
                pl.BlockSpec((1, Op), lambda i: (0, 0)),     # b2
            ],
            out_specs=pl.BlockSpec((TB, Op), lambda i: (i, 0)),
        ),
        compiler_params=_compiler_params(),
        cost_estimate=pl.CostEstimate(flops=flops, transcendentals=0,
                                      bytes_accessed=bytes_accessed),
    )(xp, w1p, b1p, w2p, b2p)
    return out[:B, :O]


def mlp_block_train(x, w1, b1, w2, b2, u1, u2, *, max_tb=256):
    """u1: uniform(0,1) mask of shape (B, H); u2: (B, O)."""
    B, Din = x.shape
    H = w1.shape[1]
    O = w2.shape[1]
    w1p, b1p, w2p, b2p, Hp, Op = _prep_params(w1, b1, w2, b2)
    TB, B_pad = _batch_tiling(B, max_tb)
    xp = _pad_rows(x, B_pad)
    nb = B_pad // TB

    # Pad masks with 1.0 (=keep) — padded lanes/rows carry zeros anyway.
    u1p = jnp.ones((B_pad, Hp), jnp.float32).at[:B, :H].set(u1)
    u2p = jnp.ones((B_pad, Op), jnp.float32).at[:B, :O].set(u2)

    flops = 2 * B_pad * Din * Hp + 2 * B_pad * Hp * Op
    bytes_accessed = (xp.size * 4 + w1p.size * 2 + w2p.size * 2
                      + b1p.size * 4 + b2p.size * 4
                      + u1p.size * 4 + u2p.size * 4 + B_pad * Op * 4)

    out = pl.pallas_call(
        mlp_train_kernel,
        out_shape=jax.ShapeDtypeStruct((B_pad, Op), jnp.float32),
        grid_spec=pltpu.PrefetchScalarGridSpec(
            num_scalar_prefetch=0,
            grid=(nb,),
            in_specs=[
                pl.BlockSpec((TB, Din), lambda i: (i, 0)),   # x
                pl.BlockSpec((Din, Hp), lambda i: (0, 0)),   # W1
                pl.BlockSpec((1, Hp), lambda i: (0, 0)),     # b1
                pl.BlockSpec((Hp, Op), lambda i: (0, 0)),    # W2
                pl.BlockSpec((1, Op), lambda i: (0, 0)),     # b2
                pl.BlockSpec((TB, Hp), lambda i: (i, 0)),    # dropout mask 1
                pl.BlockSpec((TB, Op), lambda i: (i, 0)),    # dropout mask 2
            ],
            out_specs=pl.BlockSpec((TB, Op), lambda i: (i, 0)),
        ),
        compiler_params=_compiler_params(),
        cost_estimate=pl.CostEstimate(flops=flops, transcendentals=0,
                                      bytes_accessed=bytes_accessed),
    )(xp, w1p, b1p, w2p, b2p, u1p, u2p)
    return out[:B, :O]


# ----------------------------- references -------------------------------------
def mlp_block_eval_ref(x, w1, b1, w2, b2):
    # Mirrors the kernel's bf16-input / f32-accumulate matmuls.
    h = jnp.dot(x.astype(jnp.bfloat16), w1.astype(jnp.bfloat16),
                preferred_element_type=jnp.float32)
    h = jnp.maximum(h + b1, 0.0)
    y = jnp.dot(h.astype(jnp.bfloat16), w2.astype(jnp.bfloat16),
                preferred_element_type=jnp.float32)
    return jnp.maximum(y + b2, 0.0)


def mlp_block_train_ref(x, w1, b1, w2, b2, u1, u2):
    scale = 1.0 / (1.0 - DROPOUT_P)
    h = jnp.dot(x.astype(jnp.bfloat16), w1.astype(jnp.bfloat16),
                preferred_element_type=jnp.float32)
    h = jnp.maximum(h + b1, 0.0)
    h = jnp.where(u1 >= DROPOUT_P, h * scale, 0.0)
    y = jnp.dot(h.astype(jnp.bfloat16), w2.astype(jnp.bfloat16),
                preferred_element_type=jnp.float32)
    y = jnp.maximum(y + b2, 0.0)
    return jnp.where(u2 >= DROPOUT_P, y * scale, 0.0)


# ----------------------------- params ----------------------------------------
def init_linear(key, in_dim, out_dim):
    # torch.nn.Linear default init U(-1/sqrt(in), 1/sqrt(in)); weight already
    # transposed to (in_dim, out_dim).
    kw, kb = jax.random.split(key)
    bound = 1.0 / np.sqrt(in_dim)
    w = jax.random.uniform(kw, (in_dim, out_dim), jnp.float32, -bound, bound)
    b = jax.random.uniform(kb, (1, out_dim), jnp.float32, -bound, bound)
    return w, b


if __name__ == "__main__":
    B, IN_DIM, HIDDEN, OUT_DIM = 8, 32, 64, 16

    key = jax.random.PRNGKey(0)
    kx, k1, k2, km1, km2 = jax.random.split(key, 5)

    x = jax.random.normal(kx, (B, IN_DIM), jnp.float32)
    w1, b1 = init_linear(k1, IN_DIM, HIDDEN)
    w2, b2 = init_linear(k2, HIDDEN, OUT_DIM)

    # ---- Eval mode (dropout = identity) ----
    out_eval = jax.block_until_ready(mlp_block_eval(x, w1, b1, w2, b2))
    ref_eval = mlp_block_eval_ref(x, w1, b1, w2, b2)
    np.testing.assert_allclose(np.asarray(out_eval), np.asarray(ref_eval),
                               rtol=2e-2, atol=2e-2)

    # ---- Train mode (inverted dropout, deterministic precomputed masks) ----
    u1 = jax.random.uniform(km1, (B, HIDDEN), jnp.float32)
    u2 = jax.random.uniform(km2, (B, OUT_DIM), jnp.float32)
    out_train = jax.block_until_ready(
        mlp_block_train(x, w1, b1, w2, b2, u1, u2))
    ref_train = mlp_block_train_ref(x, w1, b1, w2, b2, u1, u2)
    np.testing.assert_allclose(np.asarray(out_train), np.asarray(ref_train),
                               rtol=2e-2, atol=2e-2)
    assert out_train.shape == (B, OUT_DIM)
    assert bool(jnp.all(jnp.isfinite(out_train)))

    print("KERNEL_OK")
</pallas_src>

<mosaic_0001>
module attributes {stable_mosaic.version = 11 : i64} {
  func.func @mlp_eval_kernel(%arg0: i32, %arg1: memref<8x32xf32, #tpu.memory_space<vmem>>, %arg2: memref<32x128xbf16, #tpu.memory_space<vmem>>, %arg3: memref<1x128xf32, #tpu.memory_space<vmem>>, %arg4: memref<128x128xbf16, #tpu.memory_space<vmem>>, %arg5: memref<1x128xf32, #tpu.memory_space<vmem>>, %arg6: memref<8x128xf32, #tpu.memory_space<vmem>>) attributes {dimension_semantics = [#tpu.dimension_semantics<parallel>], iteration_bounds = array<i64: 1>, scalar_prefetch = 0 : i64, scratch_operands = 0 : i64, tpu.core_type = #tpu.core_type<tc>, window_params = [{transform_indices = @transform_0, window_bounds = array<i64: 8, 32>}, {pipeline_mode = #tpu.pipeline_mode<synchronous>, transform_indices = @transform_1, window_bounds = array<i64: 32, 128>}, {pipeline_mode = #tpu.pipeline_mode<synchronous>, transform_indices = @transform_2, window_bounds = array<i64: 1, 128>}, {pipeline_mode = #tpu.pipeline_mode<synchronous>, transform_indices = @transform_3, window_bounds = array<i64: 128, 128>}, {pipeline_mode = #tpu.pipeline_mode<synchronous>, transform_indices = @transform_4, window_bounds = array<i64: 1, 128>}, {transform_indices = @transform_5, window_bounds = array<i64: 8, 128>}]} {
    %c0 = arith.constant 0 : index
    %c0_0 = arith.constant 0 : index
    %0 = vector.load %arg1[%c0, %c0_0] : memref<8x32xf32, #tpu.memory_space<vmem>>, vector<8x32xf32>
    %1 = arith.truncf %0 : vector<8x32xf32> to vector<8x32xbf16>
    %c0_1 = arith.constant 0 : index
    %c0_2 = arith.constant 0 : index
    %2 = vector.load %arg2[%c0_1, %c0_2] : memref<32x128xbf16, #tpu.memory_space<vmem>>, vector<32x128xbf16>
    %cst = arith.constant dense<0.000000e+00> : vector<8x128xf32>
    %3 = tpu.matmul %1, %2, %cst {dimension_numbers = #tpu.dot_dimension_numbers<[1], [0], [0], [1], [0, 0, 1, 1], [], []>} : vector<8x32xbf16>, vector<32x128xbf16>, vector<8x128xf32> -> vector<8x128xf32>
    %c0_3 = arith.constant 0 : index
    %c0_4 = arith.constant 0 : index
    %4 = vector.load %arg3[%c0_3, %c0_4] : memref<1x128xf32, #tpu.memory_space<vmem>>, vector<1x128xf32>
    %5 = vector.broadcast %4 : vector<1x128xf32> to vector<8x128xf32>
    %6 = arith.addf %3, %5 : vector<8x128xf32>
    %cst_5 = arith.constant 0.000000e+00 : f32
    %7 = vector.broadcast %cst_5 : f32 to vector<8x128xf32>
    %8 = arith.maximumf %6, %7 : vector<8x128xf32>
    %9 = arith.truncf %8 : vector<8x128xf32> to vector<8x128xbf16>
    %c0_6 = arith.constant 0 : index
    %c0_7 = arith.constant 0 : index
    %10 = vector.load %arg4[%c0_6, %c0_7] : memref<128x128xbf16, #tpu.memory_space<vmem>>, vector<128x128xbf16>
    %cst_8 = arith.constant dense<0.000000e+00> : vector<8x128xf32>
    %11 = tpu.matmul %9, %10, %cst_8 {dimension_numbers = #tpu.dot_dimension_numbers<[1], [0], [0], [1], [0, 0, 1, 1], [], []>} : vector<8x128xbf16>, vector<128x128xbf16>, vector<8x128xf32> -> vector<8x128xf32>
    %c0_9 = arith.constant 0 : index
    %c0_10 = arith.constant 0 : index
    %12 = vector.load %arg5[%c0_9, %c0_10] : memref<1x128xf32, #tpu.memory_space<vmem>>, vector<1x128xf32>
    %13 = vector.broadcast %12 : vector<1x128xf32> to vector<8x128xf32>
    %14 = arith.addf %11, %13 : vector<8x128xf32>
    %cst_11 = arith.constant 0.000000e+00 : f32
    %15 = vector.broadcast %cst_11 : f32 to vector<8x128xf32>
    %16 = arith.maximumf %14, %15 : vector<8x128xf32>
    %c0_12 = arith.constant 0 : index
    %c0_13 = arith.constant 0 : index
    %17 = vector.load %arg6[%c0_12, %c0_13] : memref<8x128xf32, #tpu.memory_space<vmem>>, vector<8x128xf32>
    tpu.vector_store %arg6[%c0_12, %c0_13], %16 {strides = array<i32>} : memref<8x128xf32, #tpu.memory_space<vmem>>, vector<8x128xf32>,
    return
  }
  func.func @transform_0(%arg0: i32) -> (i32, i32) {
    %c0_i32 = arith.constant 0 : i32
    %c0_i32_0 = arith.constant 0 : i32
    return %arg0, %c0_i32 : i32, i32
  }
  func.func @transform_1(%arg0: i32) -> (i32, i32) {
    %c0_i32 = arith.constant 0 : i32
    %c0_i32_0 = arith.constant 0 : i32
    %c0_i32_1 = arith.constant 0 : i32
    return %c0_i32, %c0_i32_0 : i32, i32
  }
  func.func @transform_2(%arg0: i32) -> (i32, i32) {
    %c0_i32 = arith.constant 0 : i32
    %c0_i32_0 = arith.constant 0 : i32
    %c0_i32_1 = arith.constant 0 : i32
    return %c0_i32, %c0_i32_0 : i32, i32
  }
  func.func @transform_3(%arg0: i32) -> (i32, i32) {
    %c0_i32 = arith.constant 0 : i32
    %c0_i32_0 = arith.constant 0 : i32
    %c0_i32_1 = arith.constant 0 : i32
    return %c0_i32, %c0_i32_0 : i32, i32
  }
  func.func @transform_4(%arg0: i32) -> (i32, i32) {
    %c0_i32 = arith.constant 0 : i32
    %c0_i32_0 = arith.constant 0 : i32
    %c0_i32_1 = arith.constant 0 : i32
    return %c0_i32, %c0_i32_0 : i32, i32
  }
  func.func @transform_5(%arg0: i32) -> (i32, i32) {
    %c0_i32 = arith.constant 0 : i32
    %c0_i32_0 = arith.constant 0 : i32
    return %arg0, %c0_i32 : i32, i32
  }
}

</mosaic_0001>

<llo_original>
// kernel: tpu_custom_call.1
$region0: #{tpu_custom_call.1}
  #allocation0 [shape = 'u32[]', space=smem, size = 0x4, offset = 0x4, fixed_abs, tag = 'smem constant byte address 0x4 - core index']
  #allocation1 [shape = 'u32[72,128]{1,0:T(1,128)}', space=vmem, size = 0x9000, scoped, tag = 'internal scratch']
  %s0 = inlined_call_operand.hbm [shape: f32[8,32], index: 0, kind: input, shape index: {}]
  %s1 = inlined_call_operand.hbm [shape: bf16[32,128], index: 1, kind: input, shape index: {}]
  %s2 = inlined_call_operand.vmem [shape: f32[1,128], index: 2, kind: input, shape index: {}]
  %s3 = inlined_call_operand.hbm [shape: bf16[128,128], index: 3, kind: input, shape index: {}]
  %s4 = inlined_call_operand.vmem [shape: f32[1,128], index: 4, kind: input, shape index: {}]
  %s5 = inlined_call_operand.hbm [shape: f32[8,128], index: 5, kind: output, shape index: {}]
  %s6 = sld [smem:[#allocation0]]
  $region42: #{tpu_custom_call.1} parent=0
    _
  %s8 = ssub.s32 1, %s6
  %s9 = scalar_select 0, %s8, %s6
  $region1: #{tpu_custom_call.1} parent=0
    #allocation2 [shape = 'u8[4096]{0}', space=vmem, size = 0x1000, scoped, tag = 'input window, operand 0, single buffered']
    #allocation3 [shape = 's32[1]{0}', space=sflag, size = 0x4, scoped, tag = 'scoped memory for tpu_custom_call.1']
    #allocation4 [shape = 's32[1]{0}', space=sflag, size = 0x4, scoped, tag = 'scoped memory for tpu_custom_call.1']
    #allocation5 [shape = 'u8[8192]{0}', space=vmem, size = 0x2000, scoped, tag = 'input window, operand 1, single buffered']
    #allocation6 [shape = 's32[1]{0}', space=sflag, size = 0x4, scoped, tag = 'scoped memory for tpu_custom_call.1']
    #allocation7 [shape = 'u8[32768]{0}', space=vmem, size = 0x8000, scoped, tag = 'input window, operand 3, single buffered']
    #allocation8 [shape = 'u8[4096]{0}', space=vmem, size = 0x1000, scoped, tag = 'output window, operand 0, single buffered']
    %10 = vsyncpa [#allocation3], 0
    %11 = vsyncpa [#allocation6], 0
    %12 = vsyncpa [#allocation4], 0
    // Predicated region
    $region2: #{tpu_custom_call.1} parent=1 // pred_check
      _
    $region3: #{tpu_custom_call.1} parent=1 // pred_check_branch
      %14 = sbr.rel (0) target = $region5
    $region4: #{tpu_custom_call.1} parent=1 // pred_region
      %16 = vsyncadd [#allocation3], 0
      %s18 = sshll.u32 %s0, 4
      %s19 = int_to_ptr.hbm [resolvable:$true] %s18
      %s20 = sshll.u32 [#allocation2], 4
      %s21 = int_to_ptr.vmem [resolvable:$true] %s20
      %23 = dma.hbm_to_vmem [thread:$0]  %s19, 128, %s21, [#allocation3]
    $region5: #{tpu_custom_call.1} parent=1 // pred_fallthru
      _
    // Predicated region
    $region6: #{tpu_custom_call.1} parent=1 // pred_check
      _
    $region7: #{tpu_custom_call.1} parent=1 // pred_check_branch
      %25 = sbr.rel (0) target = $region9
    $region8: #{tpu_custom_call.1} parent=1 // pred_region
      %27 = vsyncadd [#allocation6], 0
      %s28 = sshll.u32 %s1, 4
      %s29 = int_to_ptr.hbm [resolvable:$true] %s28
      %s30 = sshll.u32 [#allocation5], 4
      %s31 = int_to_ptr.vmem [resolvable:$true] %s30
      %36 = dma.hbm_to_vmem [thread:$0]  %s29, 256, %s31, [#allocation6], 64, 64, 4
    $region9: #{tpu_custom_call.1} parent=1 // pred_fallthru
      _
    // Predicated region
    $region10: #{tpu_custom_call.1} parent=1 // pred_check
      _
    $region11: #{tpu_custom_call.1} parent=1 // pred_check_branch
      %38 = sbr.rel (0) target = $region13
    $region12: #{tpu_custom_call.1} parent=1 // pred_region
      _
    $region13: #{tpu_custom_call.1} parent=1 // pred_fallthru
      _
    // Predicated region
    $region14: #{tpu_custom_call.1} parent=1 // pred_check
      _
    $region15: #{tpu_custom_call.1} parent=1 // pred_check_branch
      %40 = sbr.rel (0) target = $region17
    $region16: #{tpu_custom_call.1} parent=1 // pred_region
      %42 = vsyncadd [#allocation6], 0
      %s43 = sshll.u32 %s3, 4
      %s44 = int_to_ptr.hbm [resolvable:$true] %s43
      %s45 = sshll.u32 [#allocation7], 4
      %s46 = int_to_ptr.vmem [resolvable:$true] %s45
      %51 = dma.hbm_to_vmem [thread:$0]  %s44, 1024, %s46, [#allocation6], 64, 64, 4
    $region17: #{tpu_custom_call.1} parent=1 // pred_fallthru
      _
    // Predicated region
    $region18: #{tpu_custom_call.1} parent=1 // pred_check
      _
    $region19: #{tpu_custom_call.1} parent=1 // pred_check_branch
      %53 = sbr.rel (0) target = $region21
    $region20: #{tpu_custom_call.1} parent=1 // pred_region
      _
    $region21: #{tpu_custom_call.1} parent=1 // pred_fallthru
      _
    // Predicated region
    $region22: #{tpu_custom_call.1} parent=1 // pred_check
      _
    $region23: #{tpu_custom_call.1} parent=1 // pred_check_branch
      %55 = sbr.rel (0) target = $region25
    $region24: #{tpu_custom_call.1} parent=1 // pred_region
      %57 = dma.done [#allocation3], 128
    $region25: #{tpu_custom_call.1} parent=1 // pred_fallthru
      _
    // Predicated region
    $region26: #{tpu_custom_call.1} parent=1 // pred_check
      _
    $region27: #{tpu_custom_call.1} parent=1 // pred_check_branch
      %59 = sbr.rel (0) target = $region29
    $region28: #{tpu_custom_call.1} parent=1 // pred_region
      %61 = dma.done [#allocation6], 256
    $region29: #{tpu_custom_call.1} parent=1 // pred_fallthru
      _
    // Predicated region
    $region30: #{tpu_custom_call.1} parent=1 // pred_check
      _
    $region31: #{tpu_custom_call.1} parent=1 // pred_check_branch
      %63 = sbr.rel (0) target = $region33
    $region32: #{tpu_custom_call.1} parent=1 // pred_region
      %65 = dma.done [#allocation6], 1024
    $region33: #{tpu_custom_call.1} parent=1 // pred_fallthru
      _
    %v67 = vld [vmem:[#allocation2] sm:$0xff]
    %v68 = vpack.c.bf16 %v67, %v67
    %v69 = vld [vmem:[#allocation5] sm:$0xf]
    %v70 = vld [vmem:[#allocation5 + $0x4] sm:$0xf]
    %v71 = vld [vmem:[#allocation5 + $0x8] sm:$0xf]
    %v72 = vld [vmem:[#allocation5 + $0xc] sm:$0xf]
    %v73 = vld [vmem:[%s2] sm:$0x1]
    %v75 = vperm.slane %v73, 0
    %v81 = vunpack.c.l.b16 %v69
    %v82 = vunpack.c.l.b16 %v70
    %v83 = vunpack.c.l.b16 %v71
    %v84 = vunpack.c.l.b16 %v72
    %v85 = vpack.c.b16 %v82, %v81
    %v86 = vpack.c.b16 %v84, %v83
    %vm89 = vcmask 261120
    %v91 = vsel %vm89, %v68, 0
    %93 = vmatpush.bf16.msra.mxu0 0
    %94 = vmatpush.bf16.msra.mxu0 0
    %95 = vmatpush.bf16.msra.mxu0 0
    %96 = vmatpush.bf16.msra.mxu0 0
    %97 = vmatpush.bf16.msra.mxu0 0
    %98 = vmatpush.bf16.msra.mxu0 0
    %99 = vmatpush.bf16.msra.mxu0 %v86
    %100 = vmatpush.bf16.msra.mxu0 %v85
    %101 = vmatmul.bf16.gmra.mxu0 %v91
    %v102 = vpop.f32.mrf.mxu0
    %v103 = vadd.f32 %v75, %v102
    %v104 = vpop.f32.mrf.mxu0
    %105 = vdwg.mxu0
    %v106 = vmax.f32 %v103, 0.0
    %v107 = vpack.c.bf16 %v106, %v106
    %v108 = vld [vmem:[#allocation7] sm:$0xf]
    %v109 = vld [vmem:[#allocation7 + $0x4] sm:$0xf]
    %v110 = vld [vmem:[#allocation7 + $0x8] sm:$0xf]
    %v111 = vld [vmem:[#allocation7 + $0xc] sm:$0xf]
    %v112 = vld [vmem:[#allocation7 + $0x10] sm:$0xf]
    %v113 = vld [vmem:[#allocation7 + $0x14] sm:$0xf]
    %v114 = vld [vmem:[#allocation7 + $0x18] sm:$0xf]
    %v115 = vld [vmem:[#allocation7 + $0x1c] sm:$0xf]
    %v116 = vld [vmem:[#allocation7 + $0x20] sm:$0xf]
    %v117 = vld [vmem:[#allocation7 + $0x24] sm:$0xf]
    %v118 = vld [vmem:[#allocation7 + $0x28] sm:$0xf]
    %v119 = vld [vmem:[#allocation7 + $0x2c] sm:$0xf]
    %v120 = vld [vmem:[#allocation7 + $0x30] sm:$0xf]
    %v121 = vld [vmem:[#allocation7 + $0x34] sm:$0xf]
    %v122 = vld [vmem:[#allocation7 + $0x38] sm:$0xf]
    %v123 = vld [vmem:[#allocation7 + $0x3c] sm:$0xf]
    %v124 = vld [vmem:[%s4] sm:$0x1]
    %v126 = vperm.slane %v124, 0
    %v144 = vunpack.c.l.b16 %v108
    %v145 = vunpack.c.l.b16 %v109
    %v146 = vunpack.c.l.b16 %v110
    %v147 = vunpack.c.l.b16 %v111
    %v148 = vunpack.c.l.b16 %v112
    %v149 = vunpack.c.l.b16 %v113
    %v150 = vunpack.c.l.b16 %v114
    %v151 = vunpack.c.l.b16 %v115
    %v152 = vunpack.c.l.b16 %v116
    %v153 = vunpack.c.l.b16 %v117
    %v154 = vunpack.c.l.b16 %v118
    %v155 = vunpack.c.l.b16 %v119
    %v156 = vunpack.c.l.b16 %v120
    %v157 = vunpack.c.l.b16 %v121
    %v158 = vunpack.c.l.b16 %v122
    %v159 = vunpack.c.l.b16 %v123
    %v160 = vpack.c.b16 %v145, %v144
    %v161 = vpack.c.b16 %v147, %v146
    %v162 = vpack.c.b16 %v149, %v148
    %v163 = vpack.c.b16 %v151, %v150
    %v164 = vpack.c.b16 %v153, %v152
    %v165 = vpack.c.b16 %v155, %v154
    %v166 = vpack.c.b16 %v157, %v156
    %v167 = vpack.c.b16 %v159, %v158
    %176 = vmatpush.bf16.msra.mxu0 %v167
    %177 = vmatpush.bf16.msra.mxu0 %v166
    %178 = vmatpush.bf16.msra.mxu0 %v165
    %179 = vmatpush.bf16.msra.mxu0 %v164
    %180 = vmatpush.bf16.msra.mxu0 %v163
    %181 = vmatpush.bf16.msra.mxu0 %v162
    %182 = vmatpush.bf16.msra.mxu0 %v161
    %183 = vmatpush.bf16.msra.mxu0 %v160
    %184 = vmatmul.bf16.gmra.mxu0 %v107
    %v185 = vpop.f32.mrf.mxu0
    %v186 = vadd.f32 %v126, %v185
    %v187 = vpop.f32.mrf.mxu0
    %188 = vdwg.mxu0
    %v189 = vmax.f32 %v186, 0.0
    %190 = vst [vmem:[#allocation8] sm:$0xff] %v189
    // Predicated region
    $region34: #{tpu_custom_call.1} parent=1 // pred_check
      _
    $region35: #{tpu_custom_call.1} parent=1 // pred_check_branch
      %192 = sbr.rel (0) target = $region37
    $region36: #{tpu_custom_call.1} parent=1 // pred_region
      %194 = vsyncadd [#allocation4], 0
      %s196 = sshll.u32 [#allocation8], 4
      %s197 = int_to_ptr.vmem [resolvable:$true] %s196
      %s198 = sshll.u32 %s5, 4
      %s199 = int_to_ptr.hbm [resolvable:$true] %s198
      %201 = dma.vmem_to_hbm [thread:$0]  %s197, 128, %s199, [#allocation4]
    $region37: #{tpu_custom_call.1} parent=1 // pred_fallthru
      _
    // Predicated region
    $region38: #{tpu_custom_call.1} parent=1 // pred_check
      _
    $region39: #{tpu_custom_call.1} parent=1 // pred_check_branch
      %203 = sbr.rel (0) target = $region41
    $region40: #{tpu_custom_call.1} parent=1 // pred_region
      %205 = dma.done [#allocation4], 128
    $region41: #{tpu_custom_call.1} parent=1 // pred_fallthru
      _
    %206 = vsyncpa [#allocation3], 1
    %207 = vsyncpa [#allocation6], 1
    %208 = vsyncpa [#allocation4], 1

</llo_original>
